<compile_context>
chip_gen: v7x
topology: tpu7x:2x2x1
jax: 0.10.0
libtpu: 0.0.40
codegen_flags: <defaults>
</compile_context>

<pallas_src>
import jax
import jax.numpy as jnp
from jax.experimental import pallas as pl
from jax.experimental.pallas import tpu as pltpu


def _mlp_head_kernel(x_ref, w1_ref, gamma_ref, beta_ref, w2_ref, b2_ref, o_ref):
    """Grid axis 0 = hidden-dim (H) tiles; output block resident across it."""
    eps = 1e-5
    k = pl.program_id(0)

    @pl.when(k == 0)
    def _init():
        o_ref[...] = jnp.zeros_like(o_ref)

    # ---- Linear 1 on this H-tile (bf16 MXU operands, f32 accumulation). ----
    # b1 intentionally omitted: exactly cancelled by training-mode BN mean.
    h = jnp.dot(x_ref[...], w1_ref[...],
                preferred_element_type=jnp.float32)            # (B, tH) f32

    # ---- BatchNorm1d (training mode, biased var) folded into scale/shift. ----
    mean = jnp.mean(h, axis=0, keepdims=True)                  # (1, tH)
    var = jnp.mean(h * h, axis=0, keepdims=True) - mean * mean # one-pass
    var = jnp.maximum(var, 0.0)                                # guard cancellation
    inv_std = jax.lax.rsqrt(var + eps)
    scale = gamma_ref[...] * inv_std                           # (1, tH)
    shift = beta_ref[...] - mean * scale                       # (1, tH)
    h = h * scale + shift                                      # 2 VPU ops / elem

    # ---- ReLU ----
    h = jnp.maximum(h, 0.0)

    # ---- Linear 2: accumulate this H-tile's contribution into the resident
    # f32 output block (no separate scratch needed). ----
    o_ref[...] += jnp.dot(h.astype(jnp.bfloat16), w2_ref[...],
                          preferred_element_type=jnp.float32)  # (B, D_out_p)

    @pl.when(k == pl.num_programs(0) - 1)
    def _finalize():
        o_ref[...] += b2_ref[...]


def prepare_mlp_head_params(w1, b1, gamma, beta, w2, b2):
    """One-time parameter prep (cast + lane-dense padding). Cache the result.

    b1 is accepted for API parity with the PyTorch module but is mathematically
    redundant under training-mode BatchNorm and is not sent to the TPU.
    """
    del b1  # exactly cancelled by the BN mean subtraction (training mode)

    d_in, hidden = w1.shape
    hidden2, d_out = w2.shape
    assert hidden2 == hidden

    # Lane-dense output: pad D_out up to a multiple of 128 so Linear-2 stores
    # are full (unmasked) vst. Padded columns are exact zeros, sliced off later.
    d_out_p = ((d_out + 127) // 128) * 128
    w2_p = jnp.zeros((hidden, d_out_p), jnp.bfloat16)
    w2_p = w2_p.at[:, :d_out].set(w2.astype(jnp.bfloat16))
    b2_p = jnp.zeros((1, d_out_p), jnp.float32)
    b2_p = b2_p.at[0, :d_out].set(b2.astype(jnp.float32))

    return dict(
        w1=w1.astype(jnp.bfloat16),              # (d_in, hidden) bf16
        gamma=gamma.reshape(1, hidden).astype(jnp.float32),
        beta=beta.reshape(1, hidden).astype(jnp.float32),
        w2_p=w2_p,                               # (hidden, d_out_p) bf16
        b2_p=b2_p,                               # (1, d_out_p) f32
        d_in=d_in, hidden=hidden, d_out=d_out, d_out_p=d_out_p,
    )


def mlp_head(x, params, *, h_tile=512):
    """x: (B, d_in) -> (B, d_out) float32. Training-mode BatchNorm semantics."""
    B, d_in = x.shape
    hidden = params["hidden"]
    d_out = params["d_out"]
    d_out_p = params["d_out_p"]
    assert d_in == params["d_in"]

    # Cast x once here (not per grid step inside the kernel body).
    x_bf16 = x.astype(jnp.bfloat16)

    # Tile the hidden dim. BN stats are per-feature, so tiling H keeps them
    # single-pass as long as the full batch stays resident.
    t_h = hidden if hidden <= h_tile else h_tile
    if t_h != hidden:
        assert hidden % t_h == 0, "hidden_dim must be divisible by h_tile"
        assert t_h % 128 == 0, "h_tile must be a multiple of 128 when tiling H"
    n_h = hidden // t_h

    flops = 2 * B * (d_in * hidden + hidden * d_out_p)
    bytes_accessed = (
        2 * (x_bf16.size + params["w1"].size + params["w2_p"].size)   # bf16
        + 4 * (params["gamma"].size + params["beta"].size
               + params["b2_p"].size + B * d_out_p))                  # f32

    grid_spec = pltpu.PrefetchScalarGridSpec(
        num_scalar_prefetch=0,
        grid=(n_h,),
        in_specs=[
            pl.BlockSpec((B, d_in), lambda k: (0, 0)),       # x: full batch, resident
            pl.BlockSpec((d_in, t_h), lambda k: (0, k)),     # W1 H-tile (bf16 stream)
            pl.BlockSpec((1, t_h), lambda k: (0, k)),        # gamma H-tile
            pl.BlockSpec((1, t_h), lambda k: (0, k)),        # beta H-tile
            pl.BlockSpec((t_h, d_out_p), lambda k: (k, 0)),  # W2 H-tile (bf16 stream)
            pl.BlockSpec((1, d_out_p), lambda k: (0, 0)),    # b2, resident
        ],
        # Constant index => output block VMEM-resident across the H reduction;
        # used directly as the f32 accumulator (no scratch).
        out_specs=pl.BlockSpec((B, d_out_p), lambda k: (0, 0)),
    )

    out_p = pl.pallas_call(
        _mlp_head_kernel,
        out_shape=jax.ShapeDtypeStruct((B, d_out_p), jnp.float32),
        grid_spec=grid_spec,
        compiler_params=pltpu.CompilerParams(
            # H axis is a reduction (output accumulator resident across it).
            dimension_semantics=("arbitrary",),
            # 48 MiB: leaves headroom on v7x (64 MiB/TC physical), fine on
            # v5e/v6e (128 MiB physical).
            vmem_limit_bytes=48 * 1024 * 1024,
        ),
        cost_estimate=pl.CostEstimate(
            flops=flops, transcendentals=0, bytes_accessed=bytes_accessed),
    )(x_bf16, params["w1"], params["gamma"], params["beta"],
      params["w2_p"], params["b2_p"])

    return out_p[:, :d_out]


def reference(x, w1, b1, gamma, beta, w2, b2):
    """Pure-f32 reference of the PyTorch forward (training-mode BatchNorm1d)."""
    eps = 1e-5
    h = x @ w1 + b1
    mean = h.mean(axis=0, keepdims=True)
    var = ((h - mean) ** 2).mean(axis=0, keepdims=True)   # biased, like BN training
    h = (h - mean) / jnp.sqrt(var + eps) * gamma + beta
    h = jnp.maximum(h, 0.0)
    return h @ w2 + b2


if __name__ == "__main__":
    # Small shapes consistent with the module's forward: x is (batch, input_dim).
    # B is a multiple of 16 so bf16 sublane packing stays unmasked.
    B, D_IN, HIDDEN, D_OUT = 16, 32, 64, 16

    key = jax.random.PRNGKey(0)
    kx, kw1, kb1, kw2, kb2 = jax.random.split(key, 5)

    x = jax.random.normal(kx, (B, D_IN), dtype=jnp.float32)

    # Deterministic synthetic parameter init (PyTorch-like uniform fan-in scaling).
    lim1 = 1.0 / (D_IN ** 0.5)
    w1 = jax.random.uniform(kw1, (D_IN, HIDDEN), jnp.float32, -lim1, lim1)
    b1 = jax.random.uniform(kb1, (HIDDEN,), jnp.float32, -lim1, lim1)
    gamma = jnp.ones((HIDDEN,), jnp.float32)   # BatchNorm1d default affine init
    beta = jnp.zeros((HIDDEN,), jnp.float32)
    lim2 = 1.0 / (HIDDEN ** 0.5)
    w2 = jax.random.uniform(kw2, (HIDDEN, D_OUT), jnp.float32, -lim2, lim2)
    b2 = jax.random.uniform(kb2, (D_OUT,), jnp.float32, -lim2, lim2)

    # Parameter prep (cast to bf16 + lane-dense padding) happens ONCE, not per call.
    params = prepare_mlp_head_params(w1, b1, gamma, beta, w2, b2)

    out = mlp_head(x, params)
    out = jax.block_until_ready(out)

    ref = reference(x, w1, b1, gamma, beta, w2, b2)
    assert out.shape == (B, D_OUT)
    # Tolerance reflects bf16 MXU operands (f32 accumulation) vs. pure-f32 reference.
    assert jnp.allclose(out, ref, atol=5e-2, rtol=5e-2), "mismatch vs reference"

    print("KERNEL_OK")
</pallas_src>

<mosaic_0001>
module attributes {stable_mosaic.version = 11 : i64} {
  func.func @_mlp_head_kernel(%arg0: i32, %arg1: memref<16x32xbf16, #tpu.memory_space<vmem>>, %arg2: memref<32x64xbf16, #tpu.memory_space<vmem>>, %arg3: memref<1x64xf32, #tpu.memory_space<vmem>>, %arg4: memref<1x64xf32, #tpu.memory_space<vmem>>, %arg5: memref<64x128xbf16, #tpu.memory_space<vmem>>, %arg6: memref<1x128xf32, #tpu.memory_space<vmem>>, %arg7: memref<16x128xf32, #tpu.memory_space<vmem>>) attributes {dimension_semantics = [#tpu.dimension_semantics<arbitrary>], iteration_bounds = array<i64: 1>, scalar_prefetch = 0 : i64, scratch_operands = 0 : i64, tpu.core_type = #tpu.core_type<tc>, window_params = [{pipeline_mode = #tpu.pipeline_mode<synchronous>, transform_indices = @transform_0, window_bounds = array<i64: 16, 32>}, {transform_indices = @transform_1, window_bounds = array<i64: 32, 64>}, {transform_indices = @transform_2, window_bounds = array<i64: 1, 64>}, {transform_indices = @transform_3, window_bounds = array<i64: 1, 64>}, {transform_indices = @transform_4, window_bounds = array<i64: 64, 128>}, {pipeline_mode = #tpu.pipeline_mode<synchronous>, transform_indices = @transform_5, window_bounds = array<i64: 1, 128>}, {pipeline_mode = #tpu.pipeline_mode<synchronous>, transform_indices = @transform_6, window_bounds = array<i64: 16, 128>}]} {
    %c0_i32 = arith.constant 0 : i32
    %0 = arith.cmpi eq, %arg0, %c0_i32 : i32
    %1 = arith.extui %0 : i1 to i32
    %c0_i32_0 = arith.constant 0 : i32
    %2 = arith.cmpi ne, %1, %c0_i32_0 : i32
    scf.if %2 {
      %cst_24 = arith.constant 0.000000e+00 : f32
      %42 = vector.broadcast %cst_24 : f32 to vector<16x128xf32>
      %c0_25 = arith.constant 0 : index
      %c0_26 = arith.constant 0 : index
      %43 = vector.load %arg7[%c0_25, %c0_26] : memref<16x128xf32, #tpu.memory_space<vmem>>, vector<16x128xf32>
      tpu.vector_store %arg7[%c0_25, %c0_26], %42 {strides = array<i32>} : memref<16x128xf32, #tpu.memory_space<vmem>>, vector<16x128xf32>,
    } else {
    }
    %c0 = arith.constant 0 : index
    %c0_1 = arith.constant 0 : index
    %3 = vector.load %arg1[%c0, %c0_1] : memref<16x32xbf16, #tpu.memory_space<vmem>>, vector<16x32xbf16>
    %c0_2 = arith.constant 0 : index
    %c0_3 = arith.constant 0 : index
    %4 = vector.load %arg2[%c0_2, %c0_3] : memref<32x64xbf16, #tpu.memory_space<vmem>>, vector<32x64xbf16>
    %cst = arith.constant dense<0.000000e+00> : vector<16x64xf32>
    %5 = tpu.matmul %3, %4, %cst {dimension_numbers = #tpu.dot_dimension_numbers<[1], [0], [0], [1], [0, 0, 1, 1], [], []>} : vector<16x32xbf16>, vector<32x64xbf16>, vector<16x64xf32> -> vector<16x64xf32>
    %cst_4 = arith.constant dense<0.000000e+00> : vector<64xf32>
    %6 = vector.multi_reduction <add>, %5, %cst_4 [0] : vector<16x64xf32> to vector<64xf32>
    %7 = vector.shape_cast %6 : vector<64xf32> to vector<1x64xf32>
    %cst_5 = arith.constant 1.600000e+01 : f32
    %8 = vector.broadcast %cst_5 : f32 to vector<1x64xf32>
    %9 = arith.divf %7, %8 : vector<1x64xf32>
    %10 = arith.mulf %5, %5 : vector<16x64xf32>
    %cst_6 = arith.constant dense<0.000000e+00> : vector<64xf32>
    %11 = vector.multi_reduction <add>, %10, %cst_6 [0] : vector<16x64xf32> to vector<64xf32>
    %12 = vector.shape_cast %11 : vector<64xf32> to vector<1x64xf32>
    %cst_7 = arith.constant 1.600000e+01 : f32
    %13 = vector.broadcast %cst_7 : f32 to vector<1x64xf32>
    %14 = arith.divf %12, %13 : vector<1x64xf32>
    %15 = arith.mulf %9, %9 : vector<1x64xf32>
    %16 = arith.subf %14, %15 : vector<1x64xf32>
    %cst_8 = arith.constant 0.000000e+00 : f32
    %17 = vector.broadcast %cst_8 : f32 to vector<1x64xf32>
    %18 = arith.maximumf %16, %17 : vector<1x64xf32>
    %cst_9 = arith.constant 9.99999974E-6 : f32
    %19 = vector.broadcast %cst_9 : f32 to vector<1x64xf32>
    %20 = arith.addf %18, %19 : vector<1x64xf32>
    %21 = math.rsqrt %20 : vector<1x64xf32>
    %c0_10 = arith.constant 0 : index
    %c0_11 = arith.constant 0 : index
    %22 = vector.load %arg3[%c0_10, %c0_11] : memref<1x64xf32, #tpu.memory_space<vmem>>, vector<1x64xf32>
    %23 = arith.mulf %22, %21 : vector<1x64xf32>
    %c0_12 = arith.constant 0 : index
    %c0_13 = arith.constant 0 : index
    %24 = vector.load %arg4[%c0_12, %c0_13] : memref<1x64xf32, #tpu.memory_space<vmem>>, vector<1x64xf32>
    %25 = arith.mulf %9, %23 : vector<1x64xf32>
    %26 = arith.subf %24, %25 : vector<1x64xf32>
    %27 = vector.broadcast %23 : vector<1x64xf32> to vector<16x64xf32>
    %28 = arith.mulf %5, %27 : vector<16x64xf32>
    %29 = vector.broadcast %26 : vector<1x64xf32> to vector<16x64xf32>
    %30 = arith.addf %28, %29 : vector<16x64xf32>
    %cst_14 = arith.constant 0.000000e+00 : f32
    %31 = vector.broadcast %cst_14 : f32 to vector<16x64xf32>
    %32 = arith.maximumf %30, %31 : vector<16x64xf32>
    %c0_15 = arith.constant 0 : index
    %c0_16 = arith.constant 0 : index
    %33 = vector.load %arg7[%c0_15, %c0_16] : memref<16x128xf32, #tpu.memory_space<vmem>>, vector<16x128xf32>
    %34 = arith.truncf %32 : vector<16x64xf32> to vector<16x64xbf16>
    %c0_17 = arith.constant 0 : index
    %c0_18 = arith.constant 0 : index
    %35 = vector.load %arg5[%c0_17, %c0_18] : memref<64x128xbf16, #tpu.memory_space<vmem>>, vector<64x128xbf16>
    %cst_19 = arith.constant dense<0.000000e+00> : vector<16x128xf32>
    %36 = tpu.matmul %34, %35, %cst_19 {dimension_numbers = #tpu.dot_dimension_numbers<[1], [0], [0], [1], [0, 0, 1, 1], [], []>} : vector<16x64xbf16>, vector<64x128xbf16>, vector<16x128xf32> -> vector<16x128xf32>
    %37 = arith.addf %33, %36 : vector<16x128xf32>
    %c0_20 = arith.constant 0 : index
    %c0_21 = arith.constant 0 : index
    %38 = vector.load %arg7[%c0_20, %c0_21] : memref<16x128xf32, #tpu.memory_space<vmem>>, vector<16x128xf32>
    tpu.vector_store %arg7[%c0_20, %c0_21], %37 {strides = array<i32>} : memref<16x128xf32, #tpu.memory_space<vmem>>, vector<16x128xf32>,
    %c0_i32_22 = arith.constant 0 : i32
    %39 = arith.cmpi eq, %arg0, %c0_i32_22 : i32
    %40 = arith.extui %39 : i1 to i32
    %c0_i32_23 = arith.constant 0 : i32
    %41 = arith.cmpi ne, %40, %c0_i32_23 : i32
    scf.if %41 {
      %c0_24 = arith.constant 0 : index
      %c0_25 = arith.constant 0 : index
      %42 = vector.load %arg7[%c0_24, %c0_25] : memref<16x128xf32, #tpu.memory_space<vmem>>, vector<16x128xf32>
      %c0_26 = arith.constant 0 : index
      %c0_27 = arith.constant 0 : index
      %43 = vector.load %arg6[%c0_26, %c0_27] : memref<1x128xf32, #tpu.memory_space<vmem>>, vector<1x128xf32>
      %44 = vector.broadcast %43 : vector<1x128xf32> to vector<16x128xf32>
      %45 = arith.addf %42, %44 : vector<16x128xf32>
      %c0_28 = arith.constant 0 : index
      %c0_29 = arith.constant 0 : index
      %46 = vector.load %arg7[%c0_28, %c0_29] : memref<16x128xf32, #tpu.memory_space<vmem>>, vector<16x128xf32>
      tpu.vector_store %arg7[%c0_28, %c0_29], %45 {strides = array<i32>} : memref<16x128xf32, #tpu.memory_space<vmem>>, vector<16x128xf32>,
    } else {
    }
    return
  }
  func.func @transform_0(%arg0: i32) -> (i32, i32) {
    %c0_i32 = arith.constant 0 : i32
    %c0_i32_0 = arith.constant 0 : i32
    %c0_i32_1 = arith.constant 0 : i32
    return %c0_i32, %c0_i32_0 : i32, i32
  }
  func.func @transform_1(%arg0: i32) -> (i32, i32) {
    %c0_i32 = arith.constant 0 : i32
    %c0_i32_0 = arith.constant 0 : i32
    return %c0_i32, %arg0 : i32, i32
  }
  func.func @transform_2(%arg0: i32) -> (i32, i32) {
    %c0_i32 = arith.constant 0 : i32
    %c0_i32_0 = arith.constant 0 : i32
    return %c0_i32, %arg0 : i32, i32
  }
  func.func @transform_3(%arg0: i32) -> (i32, i32) {
    %c0_i32 = arith.constant 0 : i32
    %c0_i32_0 = arith.constant 0 : i32
    return %c0_i32, %arg0 : i32, i32
  }
  func.func @transform_4(%arg0: i32) -> (i32, i32) {
    %c0_i32 = arith.constant 0 : i32
    %c0_i32_0 = arith.constant 0 : i32
    return %arg0, %c0_i32 : i32, i32
  }
  func.func @transform_5(%arg0: i32) -> (i32, i32) {
    %c0_i32 = arith.constant 0 : i32
    %c0_i32_0 = arith.constant 0 : i32
    %c0_i32_1 = arith.constant 0 : i32
    return %c0_i32, %c0_i32_0 : i32, i32
  }
  func.func @transform_6(%arg0: i32) -> (i32, i32) {
    %c0_i32 = arith.constant 0 : i32
    %c0_i32_0 = arith.constant 0 : i32
    %c0_i32_1 = arith.constant 0 : i32
    return %c0_i32, %c0_i32_0 : i32, i32
  }
}

</mosaic_0001>

<llo_original>
// kernel: tpu_custom_call.1
$region0: #{tpu_custom_call.1}
  #allocation0 [shape = 'u32[]', space=smem, size = 0x4, offset = 0x4, fixed_abs, tag = 'smem constant byte address 0x4 - core index']
  #allocation1 [shape = 'u32[144,128]{1,0:T(1,128)}', space=vmem, size = 0x12000, scoped, tag = 'internal scratch']
  %s0 = inlined_call_operand.hbm [shape: bf16[16,32], index: 0, kind: input, shape index: {}]
  %s1 = inlined_call_operand.hbm [shape: bf16[32,64], index: 1, kind: input, shape index: {}]
  %s2 = inlined_call_operand.vmem [shape: f32[1,64], index: 2, kind: input, shape index: {}]
  %s3 = inlined_call_operand.vmem [shape: f32[1,64], index: 3, kind: input, shape index: {}]
  %s4 = inlined_call_operand.hbm [shape: bf16[64,128], index: 4, kind: input, shape index: {}]
  %s5 = inlined_call_operand.vmem [shape: f32[1,128], index: 5, kind: input, shape index: {}]
  %s6 = inlined_call_operand.hbm [shape: f32[16,128], index: 6, kind: output, shape index: {}]
  %s7 = sld [smem:[#allocation0]]
  $region54: #{tpu_custom_call.1} parent=0
    _
  %s9 = ssub.s32 1, %s7
  %s10 = scalar_select 0, %s9, %s7
  $region1: #{tpu_custom_call.1} parent=0
    #allocation2 [shape = 'u8[4096]{0}', space=vmem, size = 0x1000, scoped, tag = 'input window, operand 0, single buffered']
    #allocation3 [shape = 's32[1]{0}', space=sflag, size = 0x4, scoped, tag = 'scoped memory for tpu_custom_call.1']
    #allocation4 [shape = 's32[1]{0}', space=sflag, size = 0x4, scoped, tag = 'scoped memory for tpu_custom_call.1']
    #allocation5 [shape = 'u8[8192]{0}', space=vmem, size = 0x2000, scoped, tag = 'input window, operand 1, single buffered']
    #allocation6 [shape = 's32[1]{0}', space=sflag, size = 0x4, scoped, tag = 'scoped memory for tpu_custom_call.1']
    #allocation7 [shape = 'u8[16384]{0}', space=vmem, size = 0x4000, scoped, tag = 'input window, operand 4, single buffered']
    #allocation8 [shape = 'u8[8192]{0}', space=vmem, size = 0x2000, scoped, tag = 'output window, operand 0, single buffered']
    %11 = vsyncpa [#allocation3], 0
    %12 = vsyncpa [#allocation6], 0
    %13 = vsyncpa [#allocation4], 0
    // Predicated region
    $region2: #{tpu_custom_call.1} parent=1 // pred_check
      _
    $region3: #{tpu_custom_call.1} parent=1 // pred_check_branch
      %15 = sbr.rel (0) target = $region5
    $region4: #{tpu_custom_call.1} parent=1 // pred_region
      %s17 = ssub.s32 128, 128
      %18 = vsyncadd [#allocation3], %s17
      %s19 = sshll.u32 [#allocation2], 4
      %s20 = int_to_ptr.vmem [resolvable:$true] %s19
      %25 = dma.hbm_to_vmem [thread:$0]  %s0, 128, %s20, [#allocation3], 64, 64, 4
    $region5: #{tpu_custom_call.1} parent=1 // pred_fallthru
      _
    // Predicated region
    $region6: #{tpu_custom_call.1} parent=1 // pred_check
      _
    $region7: #{tpu_custom_call.1} parent=1 // pred_check_branch
      %27 = sbr.rel (0) target = $region9
    $region8: #{tpu_custom_call.1} parent=1 // pred_region
      %s29 = ssub.s32 256, 256
      %30 = vsyncadd [#allocation6], %s29
      %s31 = sshll.u32 [#allocation5], 4
      %s32 = int_to_ptr.vmem [resolvable:$true] %s31
      %37 = dma.hbm_to_vmem [thread:$0]  %s1, 256, %s32, [#allocation6], 64, 64, 4
    $region9: #{tpu_custom_call.1} parent=1 // pred_fallthru
      _
    // Predicated region
    $region10: #{tpu_custom_call.1} parent=1 // pred_check
      _
    $region11: #{tpu_custom_call.1} parent=1 // pred_check_branch
      %39 = sbr.rel (0) target = $region13
    $region12: #{tpu_custom_call.1} parent=1 // pred_region
      _
    $region13: #{tpu_custom_call.1} parent=1 // pred_fallthru
      _
    // Predicated region
    $region14: #{tpu_custom_call.1} parent=1 // pred_check
      _
    $region15: #{tpu_custom_call.1} parent=1 // pred_check_branch
      %41 = sbr.rel (0) target = $region17
    $region16: #{tpu_custom_call.1} parent=1 // pred_region
      _
    $region17: #{tpu_custom_call.1} parent=1 // pred_fallthru
      _
    // Predicated region
    $region18: #{tpu_custom_call.1} parent=1 // pred_check
      _
    $region19: #{tpu_custom_call.1} parent=1 // pred_check_branch
      %43 = sbr.rel (0) target = $region21
    $region20: #{tpu_custom_call.1} parent=1 // pred_region
      %s45 = ssub.s32 512, 512
      %46 = vsyncadd [#allocation6], %s45
      %s47 = sshll.u32 [#allocation7], 4
      %s48 = int_to_ptr.vmem [resolvable:$true] %s47
      %53 = dma.hbm_to_vmem [thread:$0]  %s4, 512, %s48, [#allocation6], 64, 64, 4
    $region21: #{tpu_custom_call.1} parent=1 // pred_fallthru
      _
    // Predicated region
    $region22: #{tpu_custom_call.1} parent=1 // pred_check
      _
    $region23: #{tpu_custom_call.1} parent=1 // pred_check_branch
      %55 = sbr.rel (0) target = $region25
    $region24: #{tpu_custom_call.1} parent=1 // pred_region
      _
    $region25: #{tpu_custom_call.1} parent=1 // pred_fallthru
      _
    // Predicated region
    $region26: #{tpu_custom_call.1} parent=1 // pred_check
      _
    $region27: #{tpu_custom_call.1} parent=1 // pred_check_branch
      %57 = sbr.rel (0) target = $region29
    $region28: #{tpu_custom_call.1} parent=1 // pred_region
      %58 = dma.done [#allocation3], 128
    $region29: #{tpu_custom_call.1} parent=1 // pred_fallthru
      _
    // Predicated region
    $region30: #{tpu_custom_call.1} parent=1 // pred_check
      _
    $region31: #{tpu_custom_call.1} parent=1 // pred_check_branch
      %60 = sbr.rel (0) target = $region33
    $region32: #{tpu_custom_call.1} parent=1 // pred_region
      %61 = dma.done [#allocation6], 256
    $region33: #{tpu_custom_call.1} parent=1 // pred_fallthru
      _
    // Predicated region
    $region34: #{tpu_custom_call.1} parent=1 // pred_check
      _
    $region35: #{tpu_custom_call.1} parent=1 // pred_check_branch
      %63 = sbr.rel (0) target = $region37
    $region36: #{tpu_custom_call.1} parent=1 // pred_region
      %64 = dma.done [#allocation6], 512
    $region37: #{tpu_custom_call.1} parent=1 // pred_fallthru
      _
    %p66 = scmp.eq.s32.totalorder 0, 0
    // Predicated region
    $region38: #{tpu_custom_call.1} parent=1 // pred_check
      %p67 = pneg %p66
    $region39: #{tpu_custom_call.1} parent=1 // pred_check_branch
      %69 = sbr.rel (%p67) target = $region41
    $region40: #{tpu_custom_call.1} parent=1 // pred_region
      %70 = vst [vmem:[#allocation8] sm:$0xff] 0.0
      %71 = vst [vmem:[#allocation8 + $0x8] sm:$0xff] 0.0
    $region41: #{tpu_custom_call.1} parent=1 // pred_fallthru
      _
    %v72 = vld [vmem:[#allocation2] sm:$0xf]
    %v73 = vld [vmem:[#allocation2 + $0x4] sm:$0xf]
    %v74 = vld [vmem:[#allocation5] sm:$0xf]
    %v75 = vld [vmem:[#allocation5 + $0x4] sm:$0xf]
    %v76 = vld [vmem:[#allocation5 + $0x8] sm:$0xf]
    %v77 = vld [vmem:[#allocation5 + $0xc] sm:$0xf]
    %v80 = vunpack.c.l.b16 %v72
    %v81 = vunpack.c.l.b16 %v73
    %v82 = vpack.c.b16 %v81, %v80
    %v87 = vunpack.c.l.b16 %v74
    %v88 = vunpack.c.l.b16 %v75
    %v89 = vunpack.c.l.b16 %v76
    %v90 = vunpack.c.l.b16 %v77
    %v91 = vpack.c.b16 %v88, %v87
    %v92 = vpack.c.b16 %v90, %v89
    %vm95 = vcmask 261120
    %v97 = vsel %vm95, %v82, 0
    %99 = vmatprep.subr.bf16.mxu0 0
    %100 = vmatpush1.bf16.msra.mxu0 %v91
    %101 = vmatprep.subr.bf16.mxu0 0
    %102 = vmatpush1.bf16.msra.mxu0 %v92
    %103 = vmatprep.subr.bf16.mxu0 0
    %104 = vmatpush1.bf16.msra.mxu0 0
    %105 = vmatprep.subr.bf16.mxu0 0
    %106 = vmatpush1.bf16.msra.mxu0 0
    %107 = vmatprep.subr.bf16.mxu0 0
    %108 = vmatpush1.bf16.msra.mxu0 0
    %109 = vmatprep.subr.bf16.mxu0 0
    %110 = vmatpush1.bf16.msra.mxu0 0
    %111 = vmatprep.subr.bf16.mxu0 0
    %112 = vmatpush1.bf16.msra.mxu0 0
    %113 = vmatprep.subr.bf16.mxu0 0
    %114 = vmatpush1.bf16.msra.mxu0 0
    %115 = vmatprep.subr.bf16.mxu0 0
    %116 = vmatpush1.bf16.msra.mxu0 0
    %117 = vmatprep.subr.bf16.mxu0 0
    %118 = vmatpush1.bf16.msra.mxu0 0
    %119 = vmatprep.subr.bf16.mxu0 0
    %120 = vmatpush1.bf16.msra.mxu0 0
    %121 = vmatprep.subr.bf16.mxu0 0
    %122 = vmatpush1.bf16.msra.mxu0 0
    %123 = vmatprep.subr.bf16.mxu0 0
    %124 = vmatpush1.bf16.msra.mxu0 0
    %125 = vmatprep.subr.bf16.mxu0 0
    %126 = vmatpush1.bf16.msra.mxu0 0
    %127 = vmatprep.subr.bf16.mxu0 0
    %128 = vmatpush1.bf16.msra.mxu0 0
    %129 = vmatprep.subr.bf16.mxu0 0
    %130 = vmatpush1.bf16.msra.mxu0 0
    %131 = vmatprep.mubr.bf16.mxu0 0
    %132 = vmatmul.mubr.bf16.gmra.mrb[0].mxu0 %v97
    %v133 = vpop.f32.mrb[0].mxu0
    %v134 = vadd.f32 0.0, %v133
    %v135 = vpop.f32.mrb[0].mxu0
    %v136 = vpop.f32.mrb[0].mxu0
    %v137 = vadd.f32 0.0, %v136
    %v138 = vpop.f32.mrb[0].mxu0
    %139 = vdwg.mxu0
    %vm140 = vcmask 523264
    %v141 = vsel %vm140, %v134, 0.0
    %v142 = vsel %vm140, %v137, 0.0
    %v143 = vadd.f32 %v141, %v142
    %v144 = vrot.slane %v143, 4
    %v145 = vadd.f32 %v143, %v144
    %v146 = vrot.slane %v145, 2
    %v147 = vadd.f32 %v145, %v146
    %v148 = vrot.slane %v147, 1
    %v149 = vadd.f32 %v147, %v148
    %v150 = vrcp.pop 16.0
    %v151 = vmul.f32 %v149, %v150
    %v152 = vmul.f32 %v134, %v134
    %v153 = vmul.f32 %v137, %v137
    %v154 = vsel %vm140, %v152, 0.0
    %v155 = vsel %vm140, %v153, 0.0
    %v156 = vadd.f32 %v154, %v155
    %v157 = vrot.slane %v156, 4
    %v158 = vadd.f32 %v156, %v157
    %v159 = vrot.slane %v158, 2
    %v160 = vadd.f32 %v158, %v159
    %v161 = vrot.slane %v160, 1
    %v162 = vadd.f32 %v160, %v161
    %v163 = vmul.f32 %v162, %v150
    %v164 = vmul.f32 %v151, %v151
    %v165 = vsub.f32 %v163, %v164
    %v166 = vmax.f32 %v165, 0.0
    %v167 = vadd.f32 %v166, 1e-05
    %v168 = vrsqrt.pop %v167
    %v169 = vld [vmem:[%s2] sm:$0x1]
    %v170 = vmul.f32 %v169, %v168
    %v171 = vld [vmem:[%s3] sm:$0x1]
    %v172 = vmul.f32 %v151, %v170
    %v173 = vsub.f32 %v171, %v172
    %v175 = vlaneseq
    %v176 = vshrl.u32 %v175, 7
    %v177 = vsub.s32 0, %v176
    %v178 = vrot.slane %v170, %v177
    %v180 = vmul.f32 %v134, %v178
    %v181 = vmul.f32 %v137, %v178
    %v183 = vlaneseq
    %v184 = vshrl.u32 %v183, 7
    %v185 = vsub.s32 0, %v184
    %v186 = vrot.slane %v173, %v185
    %v188 = vadd.f32 %v180, %v186
    %v189 = vadd.f32 %v181, %v186
    %v190 = vmax.f32 %v188, 0.0
    %v191 = vmax.f32 %v189, 0.0
    %v192 = vld [vmem:[#allocation8] sm:$0xff]
    %v193 = vld [vmem:[#allocation8 + $0x8] sm:$0xff]
    %v194 = vpack.c.bf16 %v191, %v190
    %v195 = vld [vmem:[#allocation7] sm:$0xf]
    %v196 = vld [vmem:[#allocation7 + $0x4] sm:$0xf]
    %v197 = vld [vmem:[#allocation7 + $0x8] sm:$0xf]
    %v198 = vld [vmem:[#allocation7 + $0xc] sm:$0xf]
    %v199 = vld [vmem:[#allocation7 + $0x10] sm:$0xf]
    %v200 = vld [vmem:[#allocation7 + $0x14] sm:$0xf]
    %v201 = vld [vmem:[#allocation7 + $0x18] sm:$0xf]
    %v202 = vld [vmem:[#allocation7 + $0x1c] sm:$0xf]
    %v211 = vunpack.c.l.b16 %v195
    %v212 = vunpack.c.l.b16 %v196
    %v213 = vunpack.c.l.b16 %v197
    %v214 = vunpack.c.l.b16 %v198
    %v215 = vunpack.c.l.b16 %v199
    %v216 = vunpack.c.l.b16 %v200
    %v217 = vunpack.c.l.b16 %v201
    %v218 = vunpack.c.l.b16 %v202
    %v219 = vpack.c.b16 %v212, %v211
    %v220 = vpack.c.b16 %v214, %v213
    %v221 = vpack.c.b16 %v216, %v215
    %v222 = vpack.c.b16 %v218, %v217
    %v228 = vsel %vm140, %v194, 0
    %230 = vmatprep.subr.bf16.mxu0 0
    %231 = vmatpush1.bf16.msra.mxu0 %v219
    %232 = vmatprep.subr.bf16.mxu0 0
    %233 = vmatpush1.bf16.msra.mxu0 %v220
    %234 = vmatprep.subr.bf16.mxu0 0
    %235 = vmatpush1.bf16.msra.mxu0 %v221
    %236 = vmatprep.subr.bf16.mxu0 0
    %237 = vmatpush1.bf16.msra.mxu0 %v222
    %238 = vmatprep.subr.bf16.mxu0 0
    %239 = vmatpush1.bf16.msra.mxu0 0
    %240 = vmatprep.subr.bf16.mxu0 0
    %241 = vmatpush1.bf16.msra.mxu0 0
    %242 = vmatprep.subr.bf16.mxu0 0
    %243 = vmatpush1.bf16.msra.mxu0 0
    %244 = vmatprep.subr.bf16.mxu0 0
    %245 = vmatpush1.bf16.msra.mxu0 0
    %246 = vmatprep.subr.bf16.mxu0 0
    %247 = vmatpush1.bf16.msra.mxu0 0
    %248 = vmatprep.subr.bf16.mxu0 0
    %249 = vmatpush1.bf16.msra.mxu0 0
    %250 = vmatprep.subr.bf16.mxu0 0
    %251 = vmatpush1.bf16.msra.mxu0 0
    %252 = vmatprep.subr.bf16.mxu0 0
    %253 = vmatpush1.bf16.msra.mxu0 0
    %254 = vmatprep.subr.bf16.mxu0 0
    %255 = vmatpush1.bf16.msra.mxu0 0
    %256 = vmatprep.subr.bf16.mxu0 0
    %257 = vmatpush1.bf16.msra.mxu0 0
    %258 = vmatprep.subr.bf16.mxu0 0
    %259 = vmatpush1.bf16.msra.mxu0 0
    %260 = vmatprep.subr.bf16.mxu0 0
    %261 = vmatpush1.bf16.msra.mxu0 0
    %262 = vmatprep.mubr.bf16.mxu0 0
    %263 = vmatmul.mubr.bf16.gmra.mrb[0].mxu0 %v228
    %v264 = vpop.f32.mrb[0].mxu0
    %v265 = vadd.f32 0.0, %v264
    %v266 = vpop.f32.mrb[0].mxu0
    %v267 = vpop.f32.mrb[0].mxu0
    %v268 = vadd.f32 0.0, %v267
    %v269 = vpop.f32.mrb[0].mxu0
    %270 = vdwg.mxu0
    %v271 = vadd.f32 %v192, %v265
    %v272 = vadd.f32 %v193, %v268
    %273 = vst [vmem:[#allocation8] sm:$0xff] %v271
    %274 = vst [vmem:[#allocation8 + $0x8] sm:$0xff] %v272
    // Predicated region
    $region42: #{tpu_custom_call.1} parent=1 // pred_check
      %p275 = pneg %p66
    $region43: #{tpu_custom_call.1} parent=1 // pred_check_branch
      %277 = sbr.rel (%p275) target = $region45
    $region44: #{tpu_custom_call.1} parent=1 // pred_region
      %v278 = vld [vmem:[#allocation8] sm:$0xff]
      %v279 = vld [vmem:[#allocation8 + $0x8] sm:$0xff]
      %v280 = vld [vmem:[%s5] sm:$0x1]
      %v282 = vlaneseq
      %v283 = vshrl.u32 %v282, 7
      %v284 = vsub.s32 0, %v283
      %v285 = vrot.slane %v280, %v284
      %v287 = vadd.f32 %v278, %v285
      %v288 = vadd.f32 %v279, %v285
      %289 = vst [vmem:[#allocation8] sm:$0xff] %v287
      %290 = vst [vmem:[#allocation8 + $0x8] sm:$0xff] %v288
    $region45: #{tpu_custom_call.1} parent=1 // pred_fallthru
      _
    // Predicated region
    $region46: #{tpu_custom_call.1} parent=1 // pred_check
      _
    $region47: #{tpu_custom_call.1} parent=1 // pred_check_branch
      %292 = sbr.rel (0) target = $region49
    $region48: #{tpu_custom_call.1} parent=1 // pred_region
      %s294 = ssub.s32 256, 256
      %295 = vsyncadd [#allocation4], %s294
      %s296 = sshll.u32 [#allocation8], 4
      %s297 = int_to_ptr.vmem [resolvable:$true] %s296
      %302 = dma.vmem_to_hbm [thread:$0]  %s297, 256, %s6, [#allocation4], 128, 128, 8
    $region49: #{tpu_custom_call.1} parent=1 // pred_fallthru
      _
    // Predicated region
    $region50: #{tpu_custom_call.1} parent=1 // pred_check
      _
    $region51: #{tpu_custom_call.1} parent=1 // pred_check_branch
      %304 = sbr.rel (0) target = $region53
    $region52: #{tpu_custom_call.1} parent=1 // pred_region
      %305 = dma.done [#allocation4], 256
    $region53: #{tpu_custom_call.1} parent=1 // pred_fallthru
      _
    %306 = vsyncpa [#allocation3], 1
    %307 = vsyncpa [#allocation6], 1
    %308 = vsyncpa [#allocation4], 1

</llo_original>
